<compile_context>
chip_gen: v5e
topology: v5e:2x2
jax: 0.10.0
libtpu: 0.0.40
codegen_flags: <defaults>
</compile_context>

<pallas_src>
import numpy as np
import jax
import jax.numpy as jnp
from jax import lax
from jax.experimental import pallas as pl
from jax.experimental.pallas import tpu as pltpu

NEG = -1e9   # "minus infinity" sentinel: exp(NEG) == 0 in f32, sums stay finite
TP = 128     # tag axis padded to one full lane dimension (lane-dense stores)


# --------------------------------------------------------------------------
# Pallas kernel 1: leaky_relu -> (dropout as identity) -> Linear -> log_softmax
# --------------------------------------------------------------------------
def token_scores_kernel(x_ref, w_ref, b_ref, o_ref):
    x = x_ref[...]
    x = jnp.where(x >= 0, x, 0.01 * x)                 # F.leaky_relu (slope 0.01)
    # TODO(synk): nn.Dropout(0.1) is treated as eval-mode identity (deterministic forward)
    z = jnp.dot(x, w_ref[...], preferred_element_type=jnp.float32) + b_ref[...]
    m = jnp.max(z, axis=-1, keepdims=True)
    lse = jnp.log(jnp.sum(jnp.exp(z - m), axis=-1, keepdims=True)) + m
    o_ref[...] = z - lse                               # log_softmax over tag lanes


def token_scores(x2d, w, b, num_tags, tile_m=256):
    """x2d: (rows, H), rows % 8 == 0. Returns (rows, TP) lane-dense log-softmax
    scores; padded tag lanes come out ~NEG (masked off via the NEG bias)."""
    rows, H = x2d.shape
    assert rows % 8 == 0
    tm = min(tile_m, rows)
    while rows % tm:
        tm -= 8
    w_p = jnp.zeros((H, TP), jnp.float32).at[:, :num_tags].set(w)
    b_p = jnp.full((1, TP), NEG, jnp.float32).at[0, :num_tags].set(b)
    # TODO(synk): with a real encoder (H=768/1024) pad H to a multiple of 128.
    return pl.pallas_call(
        token_scores_kernel,
        out_shape=jax.ShapeDtypeStruct((rows, TP), jnp.float32),
        grid=(rows // tm,),
        in_specs=[pl.BlockSpec((tm, H), lambda i: (i, 0)),
                  pl.BlockSpec((H, TP), lambda i: (0, 0)),
                  pl.BlockSpec((1, TP), lambda i: (0, 0))],
        out_specs=pl.BlockSpec((tm, TP), lambda i: (i, 0)),
        compiler_params=pltpu.CompilerParams(
            dimension_semantics=("parallel",)),
    )(x2d, w_p, b_p)


# --------------------------------------------------------------------------
# Pallas kernel 2: CRF log-partition (denominator of AllenNLP CRF.forward)
#   forward-algorithm recursion; logsumexp done as an exp-space MXU matmul:
#     alpha' = log( exp(alpha - amax) @ exp(trans - tmax) ) + amax + tmax + emit
# --------------------------------------------------------------------------
def crf_logz_kernel(logits_ref, mask_ref, exp_trans_ref, tmax_ref,
                    start_ref, end_ref, out_ref):
    S, BB, _ = logits_ref.shape
    exp_trans = exp_trans_ref[...]          # (TP,TP) exp(trans - tmax); pads are exactly 0
    tmax = tmax_ref[...]                    # (1,TP) broadcast of max(trans)

    alpha0 = start_ref[...] + logits_ref[0]              # (BB, TP)

    def body(i, alpha):
        amax = jnp.max(alpha, axis=-1, keepdims=True)     # (BB,1)
        s = jnp.dot(jnp.exp(alpha - amax), exp_trans,     # one (BB,TP,TP) MXU matmul
                    preferred_element_type=jnp.float32)
        new = jnp.log(jnp.maximum(s, 1e-30)) + amax + tmax + logits_ref[i + 1]
        return jnp.where(mask_ref[i + 1] > 0.0, new, alpha)

    alpha = lax.fori_loop(0, S - 1, body, alpha0, unroll=(S <= 64))

    stops = alpha + end_ref[...]
    m2 = jnp.max(stops, axis=-1, keepdims=True)
    logz = jnp.log(jnp.sum(jnp.exp(stops - m2), axis=-1, keepdims=True)) + m2
    out_ref[...] = jnp.broadcast_to(logz, out_ref.shape)  # lane-dense (8,128) store


def crf_log_partition(scores_sbt, maskf, trans, start, end, batch):
    """scores_sbt: (S, BPt, TP) time-major, batch-padded, lane-padded emissions."""
    S, BPt, _ = scores_sbt.shape
    T = trans.shape[0]
    assert BPt % 8 == 0
    mask_p = jnp.zeros((S, BPt, TP), jnp.float32).at[:, :batch, :].set(
        jnp.transpose(maskf)[:, :, None])
    tmax = jnp.max(trans)
    trans_p = jnp.full((TP, TP), NEG, jnp.float32).at[:T, :T].set(trans)
    exp_trans = jnp.exp(trans_p - tmax)        # padded rows/cols underflow to 0
    tmax_row = jnp.full((1, TP), tmax, jnp.float32)
    start_p = jnp.full((1, TP), NEG, jnp.float32).at[0, :T].set(start)
    end_p = jnp.full((1, TP), NEG, jnp.float32).at[0, :T].set(end)

    # TODO(synk): for very long S, tile the time axis with an "arbitrary" grid
    # axis and carry alpha in VMEM scratch (pl.when init/finalize) so whole-S
    # residency does not blow the 64 MiB v7x VMEM budget.
    out = pl.pallas_call(
        crf_logz_kernel,
        out_shape=jax.ShapeDtypeStruct((BPt, TP), jnp.float32),
        grid=(BPt // 8,),
        in_specs=[pl.BlockSpec((S, 8, TP), lambda b: (0, b, 0)),
                  pl.BlockSpec((S, 8, TP), lambda b: (0, b, 0)),
                  pl.BlockSpec((TP, TP), lambda b: (0, 0)),
                  pl.BlockSpec((1, TP), lambda b: (0, 0)),
                  pl.BlockSpec((1, TP), lambda b: (0, 0)),
                  pl.BlockSpec((1, TP), lambda b: (0, 0))],
        out_specs=pl.BlockSpec((8, TP), lambda b: (b, 0)),
        compiler_params=pltpu.CompilerParams(
            dimension_semantics=("parallel",)),
    )(scores_sbt, mask_p, exp_trans, tmax_row, start_p, end_p)
    return out[:batch, 0]


# --------------------------------------------------------------------------
# Gold-path (numerator) score, vectorized over time (hoisted out of the kernel)
# Mirrors AllenNLP ConditionalRandomField._joint_likelihood.
# --------------------------------------------------------------------------
def gold_path_score(scores_sbt, tags, maskf, trans, start, end):
    emit = jnp.take_along_axis(scores_sbt, jnp.transpose(tags)[:, :, None],
                               axis=-1)[..., 0]                   # (S,B)
    emit_score = jnp.sum(emit * jnp.transpose(maskf), axis=0)     # (B,)
    trans_score = jnp.sum(trans[tags[:, :-1], tags[:, 1:]] * maskf[:, 1:], axis=1)
    start_score = start[tags[:, 0]]
    last_idx = jnp.sum(maskf, axis=1).astype(jnp.int32) - 1
    last_tags = jnp.take_along_axis(tags, last_idx[:, None], axis=1)[:, 0]
    end_score = end[last_tags]
    return start_score + emit_score + trans_score + end_score


# --------------------------------------------------------------------------
# Glue: encoder stub, mask update, BIO constraints, Viterbi decode (host-side)
# --------------------------------------------------------------------------
def encoder_stub(input_ids, emb_table):
    # TODO(synk): pretrained HF AutoModel encoder replaced by a deterministic
    # embedding-lookup stand-in producing last_hidden_state (B, S, H).
    return jnp.take(emb_table, input_ids, axis=0)


def update_mask(labels, attention_mask):
    is_ignore = labels == -100
    labelsU = jnp.where(is_ignore, 3, labels)
    maskU = jnp.where(is_ignore, 0, attention_mask)
    return labelsU, maskU


def bio_constraint_mask(id_to_tag):
    T = len(id_to_tag)
    start_tag, end_tag = T, T + 1
    ext = list(id_to_tag.items()) + [(start_tag, "START"), (end_tag, "END")]

    def split(t):
        if t in ("START", "END", "O"):
            return t, ""
        return t[0], t[2:]

    mask = np.zeros((T + 2, T + 2), np.float32)
    for i, frm in ext:
        if frm == "END":
            continue
        fp, fe = split(frm)
        for j, to in ext:
            if to == "START":
                continue
            tp, te = split(to)
            if fp == "START":
                ok = tp in ("O", "B")
            elif tp == "END":
                ok = fp in ("O", "B", "I")
            else:
                ok = tp in ("O", "B") or (tp == "I" and fp in ("B", "I") and fe == te)
            mask[i, j] = 1.0 if ok else 0.0
    return mask


def viterbi_decode_np(tag_sequence, transition_matrix):
    L, _ = tag_sequence.shape
    path_scores = tag_sequence[0].copy()
    history = []
    for t in range(1, L):
        summed = path_scores[:, None] + transition_matrix
        history.append(np.argmax(summed, axis=0))
        path_scores = np.max(summed, axis=0) + tag_sequence[t]
    best_last = int(np.argmax(path_scores))
    path = [best_last]
    for back in reversed(history):
        path.append(int(back[path[-1]]))
    path.reverse()
    return path, float(np.max(path_scores))


def viterbi_tags_np(scores, mask, trans, start, end, cmask):
    # TODO(synk): Viterbi backtracking with per-example dynamic lengths is done
    # host-side in numpy (mirrors AllenNLP viterbi_tags with BIO constraints).
    B, S, T = scores.shape
    st, et = T, T + 1
    trans_aug = np.full((T + 2, T + 2), -10000.0, np.float32)
    trans_aug[:T, :T] = trans * cmask[:T, :T] + -10000.0 * (1 - cmask[:T, :T])
    trans_aug[st, :T] = start * cmask[st, :T] + -10000.0 * (1 - cmask[st, :T])
    trans_aug[:T, et] = end * cmask[:T, et] + -10000.0 * (1 - cmask[:T, et])
    best_paths = []
    for b in range(B):
        L = int(mask[b].sum())
        ts = np.full((L + 2, T + 2), -10000.0, np.float32)
        ts[0, st] = 0.0
        ts[1:L + 1, :T] = scores[b, :L]
        ts[L + 1, et] = 0.0
        path, score = viterbi_decode_np(ts, trans_aug)
        best_paths.append((path[1:-1], score))
    return best_paths


def crf_forward(params, input_ids, attention_mask, labels, num_tags, cmask):
    B, S = input_ids.shape
    BP = ((B + 7) // 8) * 8
    H = params["emb"].shape[1]

    hidden = encoder_stub(input_ids, params["emb"])                  # (B,S,H)
    # Time-major + batch-padded hidden so the token-score kernel writes its
    # lane-dense (TP=128) output directly in the layout the CRF kernel reads.
    hid_t = jnp.zeros((S, BP, H), jnp.float32).at[:, :B, :].set(
        jnp.transpose(hidden, (1, 0, 2)))
    scores_sbt = token_scores(hid_t.reshape(S * BP, H), params["W"],
                              params["b"], num_tags).reshape(S, BP, TP)

    labelsU, maskU = update_mask(labels, attention_mask)
    maskf = maskU.astype(jnp.float32)

    num = gold_path_score(scores_sbt[:, :B, :], labelsU, maskf,
                          params["trans"], params["start"], params["end"])
    logz = crf_log_partition(scores_sbt, maskf, params["trans"],
                             params["start"], params["end"], B)
    loglik = num - logz
    loss = -jnp.sum(loglik) / float(B)

    scores_np = np.asarray(scores_sbt)[:, :B, :num_tags].transpose(1, 0, 2)
    best = viterbi_tags_np(scores_np, np.asarray(maskU),
                           np.asarray(params["trans"]), np.asarray(params["start"]),
                           np.asarray(params["end"]), cmask)
    preds = np.full((B, S), -100, np.int32)
    for i in range(B):
        idx, _ = best[i]
        preds[i, :len(idx)] = np.asarray(idx, np.int32)
    return {"loss": loss, "logits": jnp.asarray(preds)}


# --------------------------------------------------------------------------
if __name__ == "__main__":
    B, S, H, VOCAB = 2, 8, 32, 32
    id_to_tag = {0: "B-PER", 1: "I-PER", 2: "B-LOC", 3: "O", 4: "I-LOC"}
    T = len(id_to_tag)

    key = jax.random.PRNGKey(0)
    k1, k2, k3, k4, k5, k6, k7 = jax.random.split(key, 7)
    params = {
        "emb": jax.random.normal(k1, (VOCAB, H), jnp.float32) * 0.5,
        "W": jax.random.normal(k2, (H, T), jnp.float32) * (1.0 / np.sqrt(H)),
        "b": jnp.zeros((T,), jnp.float32),
        "trans": jax.random.normal(k3, (T, T), jnp.float32) * 0.1,
        "start": jax.random.normal(k4, (T,), jnp.float32) * 0.1,
        "end": jax.random.normal(k5, (T,), jnp.float32) * 0.1,
    }
    cmask = bio_constraint_mask(id_to_tag)

    input_ids = jax.random.randint(k6, (B, S), 0, VOCAB)
    attention_mask = jnp.ones((B, S), jnp.int32).at[1, 6:].set(0)
    labels = jax.random.randint(k7, (B, S), 0, T)
    labels = labels.at[1, 6:].set(-100)        # ignored / padded positions

    out = crf_forward(params, input_ids, attention_mask, labels, T, cmask)
    jax.block_until_ready(out["loss"])
    assert bool(jnp.isfinite(out["loss"]))
    print("KERNEL_OK")
</pallas_src>

<mosaic_0001>
module attributes {stable_mosaic.version = 11 : i64} {
  func.func @token_scores_kernel(%arg0: i32, %arg1: memref<64x32xf32, #tpu.memory_space<vmem>>, %arg2: memref<32x128xf32, #tpu.memory_space<vmem>>, %arg3: memref<1x128xf32, #tpu.memory_space<vmem>>, %arg4: memref<64x128xf32, #tpu.memory_space<vmem>>) attributes {dimension_semantics = [#tpu.dimension_semantics<parallel>], iteration_bounds = array<i64: 1>, scalar_prefetch = 0 : i64, scratch_operands = 0 : i64, tpu.core_type = #tpu.core_type<tc>, window_params = [{transform_indices = @transform_0, window_bounds = array<i64: 64, 32>}, {pipeline_mode = #tpu.pipeline_mode<synchronous>, transform_indices = @transform_1, window_bounds = array<i64: 32, 128>}, {pipeline_mode = #tpu.pipeline_mode<synchronous>, transform_indices = @transform_2, window_bounds = array<i64: 1, 128>}, {transform_indices = @transform_3, window_bounds = array<i64: 64, 128>}]} {
    %c0 = arith.constant 0 : index
    %c0_0 = arith.constant 0 : index
    %0 = vector.load %arg1[%c0, %c0_0] : memref<64x32xf32, #tpu.memory_space<vmem>>, vector<64x32xf32>
    %cst = arith.constant 0.000000e+00 : f32
    %1 = vector.broadcast %cst : f32 to vector<64x32xf32>
    %2 = arith.cmpf oge, %0, %1 : vector<64x32xf32>
    %cst_1 = arith.constant 0.00999999977 : f32
    %3 = vector.broadcast %cst_1 : f32 to vector<64x32xf32>
    %4 = arith.mulf %3, %0 : vector<64x32xf32>
    %5 = arith.select %2, %0, %4 : vector<64x32xi1>, vector<64x32xf32>
    %c0_2 = arith.constant 0 : index
    %c0_3 = arith.constant 0 : index
    %6 = vector.load %arg2[%c0_2, %c0_3] : memref<32x128xf32, #tpu.memory_space<vmem>>, vector<32x128xf32>
    %cst_4 = arith.constant dense<0.000000e+00> : vector<64x128xf32>
    %7 = tpu.matmul %5, %6, %cst_4 {dimension_numbers = #tpu.dot_dimension_numbers<[1], [0], [0], [1], [0, 0, 1, 1], [], []>} : vector<64x32xf32>, vector<32x128xf32>, vector<64x128xf32> -> vector<64x128xf32>
    %c0_5 = arith.constant 0 : index
    %c0_6 = arith.constant 0 : index
    %8 = vector.load %arg3[%c0_5, %c0_6] : memref<1x128xf32, #tpu.memory_space<vmem>>, vector<1x128xf32>
    %9 = vector.broadcast %8 : vector<1x128xf32> to vector<64x128xf32>
    %10 = arith.addf %7, %9 : vector<64x128xf32>
    %cst_7 = arith.constant dense<0xFF800000> : vector<64xf32>
    %11 = vector.multi_reduction <maximumf>, %10, %cst_7 [1] : vector<64x128xf32> to vector<64xf32>
    %12 = vector.shape_cast %11 : vector<64xf32> to vector<64x1xf32>
    %13 = vector.broadcast %12 : vector<64x1xf32> to vector<64x128xf32>
    %14 = arith.subf %10, %13 : vector<64x128xf32>
    %15 = math.exp %14 : vector<64x128xf32>
    %cst_8 = arith.constant dense<0.000000e+00> : vector<64xf32>
    %16 = vector.multi_reduction <add>, %15, %cst_8 [1] : vector<64x128xf32> to vector<64xf32>
    %17 = vector.shape_cast %16 : vector<64xf32> to vector<64x1xf32>
    %18 = math.log %17 : vector<64x1xf32>
    %19 = arith.addf %18, %12 : vector<64x1xf32>
    %20 = vector.broadcast %19 : vector<64x1xf32> to vector<64x128xf32>
    %21 = arith.subf %10, %20 : vector<64x128xf32>
    %c0_9 = arith.constant 0 : index
    %c0_10 = arith.constant 0 : index
    %22 = vector.load %arg4[%c0_9, %c0_10] : memref<64x128xf32, #tpu.memory_space<vmem>>, vector<64x128xf32>
    tpu.vector_store %arg4[%c0_9, %c0_10], %21 {strides = array<i32>} : memref<64x128xf32, #tpu.memory_space<vmem>>, vector<64x128xf32>,
    return
  }
  func.func @transform_0(%arg0: i32) -> (i32, i32) {
    %c0_i32 = arith.constant 0 : i32
    %c0_i32_0 = arith.constant 0 : i32
    return %arg0, %c0_i32 : i32, i32
  }
  func.func @transform_1(%arg0: i32) -> (i32, i32) {
    %c0_i32 = arith.constant 0 : i32
    %c0_i32_0 = arith.constant 0 : i32
    %c0_i32_1 = arith.constant 0 : i32
    return %c0_i32, %c0_i32_0 : i32, i32
  }
  func.func @transform_2(%arg0: i32) -> (i32, i32) {
    %c0_i32 = arith.constant 0 : i32
    %c0_i32_0 = arith.constant 0 : i32
    %c0_i32_1 = arith.constant 0 : i32
    return %c0_i32, %c0_i32_0 : i32, i32
  }
  func.func @transform_3(%arg0: i32) -> (i32, i32) {
    %c0_i32 = arith.constant 0 : i32
    %c0_i32_0 = arith.constant 0 : i32
    return %arg0, %c0_i32 : i32, i32
  }
}

</mosaic_0001>

<llo_original>
// kernel: tpu_custom_call.1
$region0: #{tpu_custom_call.1}
  #allocation0 [shape = 'u32[]', space=smem, size = 0x4, offset = 0x4, fixed_abs, tag = 'smem constant byte address 0x4 - core index']
  #allocation1 [shape = 'u32[72,128]{1,0:T(1,128)}', space=vmem, size = 0x9000, scoped, tag = 'internal scratch']
  %s0 = inlined_call_operand.vmem [shape: f32[64,32], index: 0, kind: input, shape index: {}]
  %s1 = inlined_call_operand.vmem [shape: f32[32,128], index: 1, kind: input, shape index: {}]
  %s2 = inlined_call_operand.vmem [shape: f32[1,128], index: 2, kind: input, shape index: {}]
  %s3 = inlined_call_operand.hbm [shape: f32[64,128], index: 3, kind: output, shape index: {}]
  %s4 = sld [smem:[#allocation0]]
  $region22: #{tpu_custom_call.1} parent=0
    _
  %s6 = ssub.s32 1, %s4
  %s7 = scalar_select 0, %s6, %s4
  $region1: #{tpu_custom_call.1} parent=0
    #allocation2 [shape = 'u8[32768]{0}', space=vmem, size = 0x8000, scoped, tag = 'output window, operand 0, single buffered']
    #allocation3 [shape = 's32[1]{0}', space=sflag, size = 0x4, scoped, tag = 'scoped memory for tpu_custom_call.1']
    %8 = vsyncpa [#allocation3], 0
    // Predicated region
    $region2: #{tpu_custom_call.1} parent=1 // pred_check
      _
    $region3: #{tpu_custom_call.1} parent=1 // pred_check_branch
      %10 = sbr.rel (0) target = $region5
    $region4: #{tpu_custom_call.1} parent=1 // pred_region
      _
    $region5: #{tpu_custom_call.1} parent=1 // pred_fallthru
      _
    // Predicated region
    $region6: #{tpu_custom_call.1} parent=1 // pred_check
      _
    $region7: #{tpu_custom_call.1} parent=1 // pred_check_branch
      %12 = sbr.rel (0) target = $region9
    $region8: #{tpu_custom_call.1} parent=1 // pred_region
      _
    $region9: #{tpu_custom_call.1} parent=1 // pred_fallthru
      _
    // Predicated region
    $region10: #{tpu_custom_call.1} parent=1 // pred_check
      _
    $region11: #{tpu_custom_call.1} parent=1 // pred_check_branch
      %14 = sbr.rel (0) target = $region13
    $region12: #{tpu_custom_call.1} parent=1 // pred_region
      _
    $region13: #{tpu_custom_call.1} parent=1 // pred_fallthru
      _
    %v15 = vld [vmem:[%s0] sm:$0xff]
    %v16 = vld [vmem:[%s0 + $0x8] sm:$0xff]
    %v17 = vld [vmem:[%s0 + $0x10] sm:$0xff]
    %v18 = vld [vmem:[%s0 + $0x18] sm:$0xff]
    %v19 = vld [vmem:[%s0 + $0x20] sm:$0xff]
    %v20 = vld [vmem:[%s0 + $0x28] sm:$0xff]
    %v21 = vld [vmem:[%s0 + $0x30] sm:$0xff]
    %v22 = vld [vmem:[%s0 + $0x38] sm:$0xff]
    %vm23 = vcmp.ge.f32.partialorder %v15, 0.0
    %vm24 = vcmp.ge.f32.partialorder %v16, 0.0
    %vm25 = vcmp.ge.f32.partialorder %v17, 0.0
    %vm26 = vcmp.ge.f32.partialorder %v18, 0.0
    %vm27 = vcmp.ge.f32.partialorder %v19, 0.0
    %vm28 = vcmp.ge.f32.partialorder %v20, 0.0
    %vm29 = vcmp.ge.f32.partialorder %v21, 0.0
    %vm30 = vcmp.ge.f32.partialorder %v22, 0.0
    %v31 = vmul.f32 %v15, 0.01
    %v32 = vmul.f32 %v16, 0.01
    %v33 = vmul.f32 %v17, 0.01
    %v34 = vmul.f32 %v18, 0.01
    %v35 = vmul.f32 %v19, 0.01
    %v36 = vmul.f32 %v20, 0.01
    %v37 = vmul.f32 %v21, 0.01
    %v38 = vmul.f32 %v22, 0.01
    %v39 = vsel %vm23, %v15, %v31
    %v40 = vsel %vm24, %v16, %v32
    %v41 = vsel %vm25, %v17, %v33
    %v42 = vsel %vm26, %v18, %v34
    %v43 = vsel %vm27, %v19, %v35
    %v44 = vsel %vm28, %v20, %v36
    %v45 = vsel %vm29, %v21, %v37
    %v46 = vsel %vm30, %v22, %v38
    %v47 = vld [vmem:[%s1] sm:$0xff]
    %v48 = vld [vmem:[%s1 + $0x8] sm:$0xff]
    %v49 = vld [vmem:[%s1 + $0x10] sm:$0xff]
    %v50 = vld [vmem:[%s1 + $0x18] sm:$0xff]
    %v51 = vld [vmem:[%s2] sm:$0x1]
    %v53 = vperm.slane %v51, 0
    %vm55 = vcmask 261120
    %v57 = vsel %vm55, %v39, 0
    %v60 = vsel %vm55, %v40, 0
    %v63 = vsel %vm55, %v41, 0
    %v66 = vsel %vm55, %v42, 0
    %v69 = vsel %vm55, %v43, 0
    %v72 = vsel %vm55, %v44, 0
    %v75 = vsel %vm55, %v45, 0
    %v78 = vsel %vm55, %v46, 0
    %80 = vmatpush.msra.mxu0 0.0
    %81 = vmatpush.msra.mxu0 0.0
    %82 = vmatpush.msra.mxu0 0.0
    %83 = vmatpush.msra.mxu0 0.0
    %84 = vmatpush.msra.mxu0 0.0
    %85 = vmatpush.msra.mxu0 0.0
    %86 = vmatpush.msra.mxu0 0.0
    %87 = vmatpush.msra.mxu0 0.0
    %88 = vmatpush.msra.mxu0 0.0
    %89 = vmatpush.msra.mxu0 0.0
    %90 = vmatpush.msra.mxu0 0.0
    %91 = vmatpush.msra.mxu0 0.0
    %92 = vmatpush.msra.mxu0 %v50
    %93 = vmatpush.msra.mxu0 %v49
    %94 = vmatpush.msra.mxu0 %v48
    %95 = vmatpush.msra.mxu0 %v47
    %96 = vmatmul.f32.gmra.mxu0 %v57
    %v97 = vpop.f32.mrf.mxu0
    %v98 = vadd.f32 %v53, %v97
    %99 = vmatmul.f32.gmra.mxu0 %v60
    %v100 = vpop.f32.mrf.mxu0
    %v101 = vadd.f32 %v53, %v100
    %102 = vmatmul.f32.gmra.mxu0 %v63
    %v103 = vpop.f32.mrf.mxu0
    %v104 = vadd.f32 %v53, %v103
    %105 = vmatmul.f32.gmra.mxu0 %v66
    %v106 = vpop.f32.mrf.mxu0
    %v107 = vadd.f32 %v53, %v106
    %108 = vmatmul.f32.gmra.mxu0 %v69
    %v109 = vpop.f32.mrf.mxu0
    %v110 = vadd.f32 %v53, %v109
    %111 = vmatmul.f32.gmra.mxu0 %v72
    %v112 = vpop.f32.mrf.mxu0
    %v113 = vadd.f32 %v53, %v112
    %114 = vmatmul.f32.gmra.mxu0 %v75
    %v115 = vpop.f32.mrf.mxu0
    %v116 = vadd.f32 %v53, %v115
    %117 = vmatmul.f32.gmra.mxu0 %v78
    %v118 = vpop.f32.mrf.mxu0
    %v119 = vadd.f32 %v53, %v118
    %120 = vdwg.mxu0
    %121 = vmax.xlane.f32.xlu0 %v98
    %v122 = vpop.xlane.xlu0 %121
    %123 = vmax.xlane.f32.xlu0 %v101
    %v124 = vpop.xlane.xlu0 %123
    %125 = vmax.xlane.f32.xlu0 %v104
    %v126 = vpop.xlane.xlu0 %125
    %127 = vmax.xlane.f32.xlu0 %v107
    %v128 = vpop.xlane.xlu0 %127
    %129 = vmax.xlane.f32.xlu0 %v110
    %v130 = vpop.xlane.xlu0 %129
    %131 = vmax.xlane.f32.xlu0 %v113
    %v132 = vpop.xlane.xlu0 %131
    %133 = vmax.xlane.f32.xlu0 %v116
    %v134 = vpop.xlane.xlu0 %133
    %135 = vmax.xlane.f32.xlu0 %v119
    %v136 = vpop.xlane.xlu0 %135
    %v137 = vsub.f32 %v98, %v122
    %v138 = vsub.f32 %v101, %v124
    %v139 = vsub.f32 %v104, %v126
    %v140 = vsub.f32 %v107, %v128
    %v141 = vsub.f32 %v110, %v130
    %v142 = vsub.f32 %v113, %v132
    %v143 = vsub.f32 %v116, %v134
    %v144 = vsub.f32 %v119, %v136
    %v145 = vmul.f32 %v137, 1.442695
    %v146 = vpow.pop %v145
    %v147 = vmul.f32 %v138, 1.442695
    %v148 = vpow.pop %v147
    %v149 = vmul.f32 %v139, 1.442695
    %v150 = vpow.pop %v149
    %v151 = vmul.f32 %v140, 1.442695
    %v152 = vpow.pop %v151
    %v153 = vmul.f32 %v141, 1.442695
    %v154 = vpow.pop %v153
    %v155 = vmul.f32 %v142, 1.442695
    %v156 = vpow.pop %v155
    %v157 = vmul.f32 %v143, 1.442695
    %v158 = vpow.pop %v157
    %v159 = vmul.f32 %v144, 1.442695
    %v160 = vpow.pop %v159
    %161 = vadd.xlane.f32.xlu0 %v146
    %v162 = vpop.xlane.xlu0 %161
    %163 = vadd.xlane.f32.xlu0 %v148
    %v164 = vpop.xlane.xlu0 %163
    %165 = vadd.xlane.f32.xlu0 %v150
    %v166 = vpop.xlane.xlu0 %165
    %167 = vadd.xlane.f32.xlu0 %v152
    %v168 = vpop.xlane.xlu0 %167
    %169 = vadd.xlane.f32.xlu0 %v154
    %v170 = vpop.xlane.xlu0 %169
    %171 = vadd.xlane.f32.xlu0 %v156
    %v172 = vpop.xlane.xlu0 %171
    %173 = vadd.xlane.f32.xlu0 %v158
    %v174 = vpop.xlane.xlu0 %173
    %175 = vadd.xlane.f32.xlu0 %v160
    %v176 = vpop.xlane.xlu0 %175
    %v177 = vlog2.pop %v162
    %v178 = vmul.f32 %v177, 0.6931472
    %v179 = vlog2.pop %v164
    %v180 = vmul.f32 %v179, 0.6931472
    %v181 = vlog2.pop %v166
    %v182 = vmul.f32 %v181, 0.6931472
    %v183 = vlog2.pop %v168
    %v184 = vmul.f32 %v183, 0.6931472
    %v185 = vlog2.pop %v170
    %v186 = vmul.f32 %v185, 0.6931472
    %v187 = vlog2.pop %v172
    %v188 = vmul.f32 %v187, 0.6931472
    %v189 = vlog2.pop %v174
    %v190 = vmul.f32 %v189, 0.6931472
    %v191 = vlog2.pop %v176
    %v192 = vmul.f32 %v191, 0.6931472
    %v193 = vadd.f32 %v178, %v122
    %v194 = vadd.f32 %v180, %v124
    %v195 = vadd.f32 %v182, %v126
    %v196 = vadd.f32 %v184, %v128
    %v197 = vadd.f32 %v186, %v130
    %v198 = vadd.f32 %v188, %v132
    %v199 = vadd.f32 %v190, %v134
    %v200 = vadd.f32 %v192, %v136
    %v201 = vsub.f32 %v98, %v193
    %v202 = vsub.f32 %v101, %v194
    %v203 = vsub.f32 %v104, %v195
    %v204 = vsub.f32 %v107, %v196
    %v205 = vsub.f32 %v110, %v197
    %v206 = vsub.f32 %v113, %v198
    %v207 = vsub.f32 %v116, %v199
    %v208 = vsub.f32 %v119, %v200
    %209 = vst [vmem:[#allocation2] sm:$0xff] %v201
    %210 = vst [vmem:[#allocation2 + $0x8] sm:$0xff] %v202
    %211 = vst [vmem:[#allocation2 + $0x10] sm:$0xff] %v203
    %212 = vst [vmem:[#allocation2 + $0x18] sm:$0xff] %v204
    %213 = vst [vmem:[#allocation2 + $0x20] sm:$0xff] %v205
    %214 = vst [vmem:[#allocation2 + $0x28] sm:$0xff] %v206
    %215 = vst [vmem:[#allocation2 + $0x30] sm:$0xff] %v207
    %216 = vst [vmem:[#allocation2 + $0x38] sm:$0xff] %v208
    // Predicated region
    $region14: #{tpu_custom_call.1} parent=1 // pred_check
      _
    $region15: #{tpu_custom_call.1} parent=1 // pred_check_branch
      %218 = sbr.rel (0) target = $region17
    $region16: #{tpu_custom_call.1} parent=1 // pred_region
      %220 = vsyncadd [#allocation3], 0
      %s221 = sshll.u32 [#allocation2], 4
      %s222 = int_to_ptr.vmem [resolvable:$true] %s221
      %s223 = sshll.u32 %s3, 4
      %s224 = int_to_ptr.hbm [resolvable:$true] %s223
      %229 = dma.vmem_to_hbm [thread:$0]  %s222, 1024, %s224, [#allocation3], 128, 128, 8
    $region17: #{tpu_custom_call.1} parent=1 // pred_fallthru
      _
    // Predicated region
    $region18: #{tpu_custom_call.1} parent=1 // pred_check
      _
    $region19: #{tpu_custom_call.1} parent=1 // pred_check_branch
      %231 = sbr.rel (0) target = $region21
    $region20: #{tpu_custom_call.1} parent=1 // pred_region
      %233 = dma.done [#allocation3], 1024
    $region21: #{tpu_custom_call.1} parent=1 // pred_fallthru
      _
    %234 = vsyncpa [#allocation3], 1

</llo_original>
